<compile_context>
chip_gen: v5e
topology: v5e:2x2
jax: 0.10.0
libtpu: 0.0.40
codegen_flags: <defaults>
</compile_context>

<pallas_src>
import functools

import jax
import jax.numpy as jnp
from jax import lax
from jax.experimental import pallas as pl
from jax.experimental.pallas import tpu as pltpu


def _round_up(x, m):
    return ((x + m - 1) // m) * m


def _mdn_kernel(k, kd, sig_max, x_ref, w_ref, b_ref, out_ref):
    # Single fused MXU pass: [TB, in_dim_p] @ [in_dim_p, n_pad], f32 accumulate.
    y = (jnp.dot(x_ref[...], w_ref[...], preferred_element_type=jnp.float32)
         + b_ref[...])

    col = lax.broadcasted_iota(jnp.int32, y.shape, 1)
    pi_mask = col < k
    sig_mask = (col >= k + kd) & (col < k + 2 * kd)
    neg = jnp.float32(-1e30)

    # Row-wise max over the pi lanes only.
    m = jnp.max(jnp.where(pi_mask, y, neg), axis=1, keepdims=True)

    if sig_max is None:
        # One EUP exp sweep: pi lanes get exp(y - m), sigma (and other) lanes
        # get exp(y).  mu / padded lanes are discarded by the final select.
        e = jnp.exp(jnp.where(pi_mask, y - m, y))
        denom = jnp.sum(jnp.where(pi_mask, e, jnp.float32(0.0)),
                        axis=1, keepdims=True)
        pi_vals = e / denom                       # exact divide: rows sum to 1
        out_ref[...] = jnp.where(pi_mask, pi_vals,
                                 jnp.where(sig_mask, e, y))
    else:
        e = jnp.exp(jnp.where(pi_mask, y - m, neg))   # non-pi lanes -> 0
        denom = jnp.sum(e, axis=1, keepdims=True)
        pi_vals = e / denom
        sig_vals = sig_max * (jax.nn.sigmoid(y) + 1e-8)
        out_ref[...] = jnp.where(pi_mask, pi_vals,
                                 jnp.where(sig_mask, sig_vals, y))


def pack_mdn_params(params, k, y_dim, dtype=jnp.float32):
    """Pack the three Linear heads into one contiguous, lane-padded [in_dim_p,
    n_pad] weight (and [1, n_pad] bias).  Do this ONCE, outside the forward."""
    in_dim = params["wpi"].shape[0]
    kd = k * y_dim
    in_dim_p = _round_up(in_dim, 8)
    n_pad = _round_up(k + 2 * kd, 128)

    w = jnp.zeros((in_dim_p, n_pad), jnp.float32)
    w = w.at[:in_dim, :k].set(params["wpi"])
    w = w.at[:in_dim, k:k + kd].set(params["wmu"])
    w = w.at[:in_dim, k + kd:k + 2 * kd].set(params["wsig"])

    b = jnp.zeros((1, n_pad), jnp.float32)
    b = b.at[:, :k].set(params["bpi"].reshape(1, k))
    b = b.at[:, k:k + kd].set(params["bmu"].reshape(1, kd))
    b = b.at[:, k + kd:k + 2 * kd].set(params["bsig"].reshape(1, kd))

    return {"w": w.astype(dtype), "b": b, "in_dim": in_dim}


def _vmem_capacity_bytes():
    try:
        return int(pltpu.get_tpu_info().vmem_capacity_bytes)
    except Exception:
        return 64 * 1024 * 1024          # conservative (v7x-sized) fallback


def mixtures_of_gaussian_forward(x, packed, k, y_dim, sig_max=None, tb=None):
    """x: [B, in_dim].  packed: output of pack_mdn_params.
    Returns dict with pi [B,k], mu/sigma [B,k,y_dim] (float32)."""
    w, b = packed["w"], packed["b"]
    in_dim_p, n_pad = w.shape
    B, in_dim = x.shape
    kd = k * y_dim
    assert in_dim == packed["in_dim"] and k + 2 * kd <= n_pad

    itemsize = jnp.dtype(w.dtype).itemsize

    def vmem_bytes(t):
        # resident fused W + bias, double-buffered x tile + output tile,
        # plus slack for in-kernel f32 temporaries (y, e, masks).
        return (itemsize * in_dim_p * n_pad + 4 * n_pad
                + 2 * t * in_dim_p * itemsize
                + 2 * t * n_pad * 4
                + 8 * t * n_pad)

    vmem_cap = _vmem_capacity_bytes()
    budget = vmem_cap // 2

    # --- batch tiling: TB multiple of 8, >=2 grid steps when possible (v7x
    #     megacore), sized against the chip's actual VMEM ---
    if tb is None:
        tb = min(2048, _round_up(B, 8))
        if B > 8:
            tb = min(tb, _round_up(-(-B // 2), 8))
    tb = max(8, _round_up(int(tb), 8))
    while tb > 8 and vmem_bytes(tb) > budget:     # applied even for user tb
        tb //= 2
    tb = max(8, _round_up(tb, 8))

    b_pad = _round_up(B, tb)
    grid = (b_pad // tb,)

    # Only pad x when actually needed (tail tile / lane alignment).
    xw = x.astype(w.dtype)
    if b_pad != B or in_dim_p != in_dim:
        xw = jnp.pad(xw, ((0, b_pad - B), (0, in_dim_p - in_dim)))

    vmem_limit = int(min(max(32 * 1024 * 1024, 2 * vmem_bytes(tb)),
                         (3 * vmem_cap) // 4))

    cost = pl.CostEstimate(
        flops=2 * b_pad * in_dim_p * n_pad,
        transcendentals=b_pad * n_pad * (1 if sig_max is None else 2),
        bytes_accessed=(itemsize * (b_pad * in_dim_p + in_dim_p * n_pad)
                        + 4 * (n_pad + b_pad * n_pad)),
    )

    kernel = functools.partial(_mdn_kernel, k, kd, sig_max)

    out = pl.pallas_call(
        kernel,
        out_shape=jax.ShapeDtypeStruct((b_pad, n_pad), jnp.float32),
        grid_spec=pltpu.PrefetchScalarGridSpec(
            num_scalar_prefetch=0,
            grid=grid,
            in_specs=[
                pl.BlockSpec((tb, in_dim_p), lambda i: (i, 0)),      # x tile
                pl.BlockSpec((in_dim_p, n_pad), lambda i: (0, 0)),   # fused W (resident)
                pl.BlockSpec((1, n_pad), lambda i: (0, 0)),          # fused bias (resident)
            ],
            out_specs=pl.BlockSpec((tb, n_pad), lambda i: (i, 0)),
        ),
        compiler_params=pltpu.CompilerParams(
            dimension_semantics=("parallel",),
            vmem_limit_bytes=vmem_limit,
        ),
        cost_estimate=cost,
    )(xw, w, b)

    return {
        "pi": out[:B, :k],
        "mu": out[:B, k:k + kd].reshape(B, k, y_dim),
        "sigma": out[:B, k + kd:k + 2 * kd].reshape(B, k, y_dim),
    }


def init_params(key, in_dim, k, y_dim):
    """Deterministic synthetic init (PyTorch Linear-like uniform scale)."""
    keys = jax.random.split(key, 6)
    scale = 1.0 / jnp.sqrt(in_dim)
    u = lambda kk, shape: jax.random.uniform(
        kk, shape, jnp.float32, minval=-scale, maxval=scale)
    return {
        "wpi":  u(keys[0], (in_dim, k)),
        "bpi":  u(keys[1], (1, k)),
        "wmu":  u(keys[2], (in_dim, k * y_dim)),
        "bmu":  u(keys[3], (1, k * y_dim)),
        "wsig": u(keys[4], (in_dim, k * y_dim)),
        "bsig": u(keys[5], (1, k * y_dim)),
    }


def _reference(x, params, k, y_dim, sig_max=None):
    pi_logit = x @ params["wpi"] + params["bpi"]
    pi = jax.nn.softmax(pi_logit, axis=1)
    mu = (x @ params["wmu"] + params["bmu"]).reshape(-1, k, y_dim)
    sigma = (x @ params["wsig"] + params["bsig"]).reshape(-1, k, y_dim)
    sigma = jnp.exp(sigma) if sig_max is None else sig_max * (jax.nn.sigmoid(sigma) + 1e-8)
    return {"pi": pi, "mu": mu, "sigma": sigma}


def _check(out, ref, atol=1e-4, rtol=1e-4):
    for name in ("pi", "mu", "sigma"):
        assert out[name].shape == ref[name].shape, name
        assert jnp.allclose(out[name], ref[name], atol=atol, rtol=rtol), name


if __name__ == "__main__":
    B, in_dim, k, y_dim = 8, 32, 5, 3

    key = jax.random.PRNGKey(0)
    kx, kp, kx2 = jax.random.split(key, 3)
    x = jax.random.normal(kx, (B, in_dim), dtype=jnp.float32)
    params = init_params(kp, in_dim, k, y_dim)
    packed = pack_mdn_params(params, k, y_dim)               # pack once, reuse

    # sig_max=None path (exp), matching the default module configuration.
    out = mixtures_of_gaussian_forward(x, packed, k, y_dim, sig_max=None)
    jax.block_until_ready(out)
    _check(out, _reference(x, params, k, y_dim, sig_max=None))

    # sig_max branch (scaled sigmoid).
    out2 = mixtures_of_gaussian_forward(x, packed, k, y_dim, sig_max=2.0)
    jax.block_until_ready(out2)
    _check(out2, _reference(x, params, k, y_dim, sig_max=2.0))

    # Multi-tile grid (batch pipelining path): B=24 with TB=8 -> grid=(3,).
    x3 = jax.random.normal(kx2, (24, in_dim), dtype=jnp.float32)
    out3 = mixtures_of_gaussian_forward(x3, packed, k, y_dim, sig_max=None, tb=8)
    jax.block_until_ready(out3)
    _check(out3, _reference(x3, params, k, y_dim, sig_max=None))

    # Optional bf16 matmul path (native MXU datapath on v6e/v7x), f32 accumulate.
    packed_bf16 = pack_mdn_params(params, k, y_dim, dtype=jnp.bfloat16)
    out4 = mixtures_of_gaussian_forward(x3, packed_bf16, k, y_dim, sig_max=None)
    jax.block_until_ready(out4)
    _check(out4, _reference(x3, params, k, y_dim, sig_max=None),
           atol=5e-2, rtol=5e-2)

    print("KERNEL_OK")
</pallas_src>

<mosaic_0001>
module attributes {stable_mosaic.version = 11 : i64} {
  func.func @_mdn_kernel(%arg0: i32, %arg1: memref<8x32xf32, #tpu.memory_space<vmem>>, %arg2: memref<32x128xf32, #tpu.memory_space<vmem>>, %arg3: memref<1x128xf32, #tpu.memory_space<vmem>>, %arg4: memref<8x128xf32, #tpu.memory_space<vmem>>) attributes {dimension_semantics = [#tpu.dimension_semantics<parallel>], iteration_bounds = array<i64: 1>, scalar_prefetch = 0 : i64, scratch_operands = 0 : i64, tpu.core_type = #tpu.core_type<tc>, window_params = [{transform_indices = @transform_0, window_bounds = array<i64: 8, 32>}, {pipeline_mode = #tpu.pipeline_mode<synchronous>, transform_indices = @transform_1, window_bounds = array<i64: 32, 128>}, {pipeline_mode = #tpu.pipeline_mode<synchronous>, transform_indices = @transform_2, window_bounds = array<i64: 1, 128>}, {transform_indices = @transform_3, window_bounds = array<i64: 8, 128>}]} {
    %c0 = arith.constant 0 : index
    %c0_0 = arith.constant 0 : index
    %0 = vector.load %arg1[%c0, %c0_0] : memref<8x32xf32, #tpu.memory_space<vmem>>, vector<8x32xf32>
    %c0_1 = arith.constant 0 : index
    %c0_2 = arith.constant 0 : index
    %1 = vector.load %arg2[%c0_1, %c0_2] : memref<32x128xf32, #tpu.memory_space<vmem>>, vector<32x128xf32>
    %cst = arith.constant dense<0.000000e+00> : vector<8x128xf32>
    %2 = tpu.matmul %0, %1, %cst {dimension_numbers = #tpu.dot_dimension_numbers<[1], [0], [0], [1], [0, 0, 1, 1], [], []>} : vector<8x32xf32>, vector<32x128xf32>, vector<8x128xf32> -> vector<8x128xf32>
    %c0_3 = arith.constant 0 : index
    %c0_4 = arith.constant 0 : index
    %3 = vector.load %arg3[%c0_3, %c0_4] : memref<1x128xf32, #tpu.memory_space<vmem>>, vector<1x128xf32>
    %4 = vector.broadcast %3 : vector<1x128xf32> to vector<8x128xf32>
    %5 = arith.addf %2, %4 : vector<8x128xf32>
    %6 = tpu.iota {dimensions = array<i32: 1>} : vector<8x128xi32>
    %c5_i32 = arith.constant 5 : i32
    %7 = vector.broadcast %c5_i32 : i32 to vector<8x128xi32>
    %8 = arith.cmpi slt, %6, %7 : vector<8x128xi32>
    %c20_i32 = arith.constant 20 : i32
    %9 = vector.broadcast %c20_i32 : i32 to vector<8x128xi32>
    %10 = arith.cmpi sge, %6, %9 : vector<8x128xi32>
    %c35_i32 = arith.constant 35 : i32
    %11 = vector.broadcast %c35_i32 : i32 to vector<8x128xi32>
    %12 = arith.cmpi slt, %6, %11 : vector<8x128xi32>
    %13 = arith.andi %10, %12 : vector<8x128xi1>
    %cst_5 = arith.constant -1.000000e+30 : f32
    %14 = vector.broadcast %cst_5 : f32 to vector<8x128xf32>
    %15 = arith.select %8, %5, %14 : vector<8x128xi1>, vector<8x128xf32>
    %cst_6 = arith.constant dense<0xFF800000> : vector<8xf32>
    %16 = vector.multi_reduction <maximumf>, %15, %cst_6 [1] : vector<8x128xf32> to vector<8xf32>
    %17 = vector.shape_cast %16 : vector<8xf32> to vector<8x1xf32>
    %18 = vector.broadcast %17 : vector<8x1xf32> to vector<8x128xf32>
    %19 = arith.subf %5, %18 : vector<8x128xf32>
    %20 = arith.select %8, %19, %5 : vector<8x128xi1>, vector<8x128xf32>
    %21 = math.exp %20 : vector<8x128xf32>
    %cst_7 = arith.constant 0.000000e+00 : f32
    %22 = vector.broadcast %cst_7 : f32 to vector<8x128xf32>
    %23 = arith.select %8, %21, %22 : vector<8x128xi1>, vector<8x128xf32>
    %cst_8 = arith.constant dense<0.000000e+00> : vector<8xf32>
    %24 = vector.multi_reduction <add>, %23, %cst_8 [1] : vector<8x128xf32> to vector<8xf32>
    %25 = vector.shape_cast %24 : vector<8xf32> to vector<8x1xf32>
    %26 = vector.broadcast %25 : vector<8x1xf32> to vector<8x128xf32>
    %27 = arith.divf %21, %26 : vector<8x128xf32>
    %28 = arith.select %13, %21, %5 : vector<8x128xi1>, vector<8x128xf32>
    %29 = arith.select %8, %27, %28 : vector<8x128xi1>, vector<8x128xf32>
    %c0_9 = arith.constant 0 : index
    %c0_10 = arith.constant 0 : index
    %30 = vector.load %arg4[%c0_9, %c0_10] : memref<8x128xf32, #tpu.memory_space<vmem>>, vector<8x128xf32>
    tpu.vector_store %arg4[%c0_9, %c0_10], %29 {strides = array<i32>} : memref<8x128xf32, #tpu.memory_space<vmem>>, vector<8x128xf32>,
    return
  }
  func.func @transform_0(%arg0: i32) -> (i32, i32) {
    %c0_i32 = arith.constant 0 : i32
    %c0_i32_0 = arith.constant 0 : i32
    return %arg0, %c0_i32 : i32, i32
  }
  func.func @transform_1(%arg0: i32) -> (i32, i32) {
    %c0_i32 = arith.constant 0 : i32
    %c0_i32_0 = arith.constant 0 : i32
    %c0_i32_1 = arith.constant 0 : i32
    return %c0_i32, %c0_i32_0 : i32, i32
  }
  func.func @transform_2(%arg0: i32) -> (i32, i32) {
    %c0_i32 = arith.constant 0 : i32
    %c0_i32_0 = arith.constant 0 : i32
    %c0_i32_1 = arith.constant 0 : i32
    return %c0_i32, %c0_i32_0 : i32, i32
  }
  func.func @transform_3(%arg0: i32) -> (i32, i32) {
    %c0_i32 = arith.constant 0 : i32
    %c0_i32_0 = arith.constant 0 : i32
    return %arg0, %c0_i32 : i32, i32
  }
}

</mosaic_0001>

<llo_original>
// kernel: tpu_custom_call.1
$region0: #{tpu_custom_call.1}
  #allocation0 [shape = 'u32[]', space=smem, size = 0x4, offset = 0x4, fixed_abs, tag = 'smem constant byte address 0x4 - core index']
  #allocation1 [shape = 'u32[72,128]{1,0:T(1,128)}', space=vmem, size = 0x9000, scoped, tag = 'internal scratch']
  %s0 = inlined_call_operand.hbm [shape: f32[8,32], index: 0, kind: input, shape index: {}]
  %s1 = inlined_call_operand.hbm [shape: f32[32,128], index: 1, kind: input, shape index: {}]
  %s2 = inlined_call_operand.vmem [shape: f32[1,128], index: 2, kind: input, shape index: {}]
  %s3 = inlined_call_operand.hbm [shape: f32[8,128], index: 3, kind: output, shape index: {}]
  %s4 = sld [smem:[#allocation0]]
  $region30: #{tpu_custom_call.1} parent=0
    _
  %s6 = ssub.s32 1, %s4
  %s7 = scalar_select 0, %s6, %s4
  $region1: #{tpu_custom_call.1} parent=0
    #allocation2 [shape = 'u8[4096]{0}', space=vmem, size = 0x1000, scoped, tag = 'input window, operand 0, single buffered']
    #allocation3 [shape = 's32[1]{0}', space=sflag, size = 0x4, scoped, tag = 'scoped memory for tpu_custom_call.1']
    #allocation4 [shape = 's32[1]{0}', space=sflag, size = 0x4, scoped, tag = 'scoped memory for tpu_custom_call.1']
    #allocation5 [shape = 'u8[16384]{0}', space=vmem, size = 0x4000, scoped, tag = 'input window, operand 1, single buffered']
    #allocation6 [shape = 's32[1]{0}', space=sflag, size = 0x4, scoped, tag = 'scoped memory for tpu_custom_call.1']
    #allocation7 [shape = 'u8[4096]{0}', space=vmem, size = 0x1000, scoped, tag = 'output window, operand 0, single buffered']
    %8 = vsyncpa [#allocation3], 0
    %9 = vsyncpa [#allocation6], 0
    %10 = vsyncpa [#allocation4], 0
    // Predicated region
    $region2: #{tpu_custom_call.1} parent=1 // pred_check
      _
    $region3: #{tpu_custom_call.1} parent=1 // pred_check_branch
      %12 = sbr.rel (0) target = $region5
    $region4: #{tpu_custom_call.1} parent=1 // pred_region
      %14 = vsyncadd [#allocation3], 0
      %s16 = sshll.u32 %s0, 4
      %s17 = int_to_ptr.hbm [resolvable:$true] %s16
      %s18 = sshll.u32 [#allocation2], 4
      %s19 = int_to_ptr.vmem [resolvable:$true] %s18
      %21 = dma.hbm_to_vmem [thread:$0]  %s17, 128, %s19, [#allocation3]
    $region5: #{tpu_custom_call.1} parent=1 // pred_fallthru
      _
    // Predicated region
    $region6: #{tpu_custom_call.1} parent=1 // pred_check
      _
    $region7: #{tpu_custom_call.1} parent=1 // pred_check_branch
      %23 = sbr.rel (0) target = $region9
    $region8: #{tpu_custom_call.1} parent=1 // pred_region
      %25 = vsyncadd [#allocation6], 0
      %s26 = sshll.u32 %s1, 4
      %s27 = int_to_ptr.hbm [resolvable:$true] %s26
      %s28 = sshll.u32 [#allocation5], 4
      %s29 = int_to_ptr.vmem [resolvable:$true] %s28
      %34 = dma.hbm_to_vmem [thread:$0]  %s27, 512, %s29, [#allocation6], 128, 128, 8
    $region9: #{tpu_custom_call.1} parent=1 // pred_fallthru
      _
    // Predicated region
    $region10: #{tpu_custom_call.1} parent=1 // pred_check
      _
    $region11: #{tpu_custom_call.1} parent=1 // pred_check_branch
      %36 = sbr.rel (0) target = $region13
    $region12: #{tpu_custom_call.1} parent=1 // pred_region
      _
    $region13: #{tpu_custom_call.1} parent=1 // pred_fallthru
      _
    // Predicated region
    $region14: #{tpu_custom_call.1} parent=1 // pred_check
      _
    $region15: #{tpu_custom_call.1} parent=1 // pred_check_branch
      %38 = sbr.rel (0) target = $region17
    $region16: #{tpu_custom_call.1} parent=1 // pred_region
      %40 = dma.done [#allocation3], 128
    $region17: #{tpu_custom_call.1} parent=1 // pred_fallthru
      _
    // Predicated region
    $region18: #{tpu_custom_call.1} parent=1 // pred_check
      _
    $region19: #{tpu_custom_call.1} parent=1 // pred_check_branch
      %42 = sbr.rel (0) target = $region21
    $region20: #{tpu_custom_call.1} parent=1 // pred_region
      %44 = dma.done [#allocation6], 512
    $region21: #{tpu_custom_call.1} parent=1 // pred_fallthru
      _
    %v45 = vld [vmem:[#allocation2] sm:$0xff]
    %v46 = vld [vmem:[#allocation5] sm:$0xff]
    %v47 = vld [vmem:[#allocation5 + $0x8] sm:$0xff]
    %v48 = vld [vmem:[#allocation5 + $0x10] sm:$0xff]
    %v49 = vld [vmem:[#allocation5 + $0x18] sm:$0xff]
    %v50 = vld [vmem:[%s2] sm:$0x1]
    %v52 = vperm.slane %v50, 0
    %vm54 = vcmask 261120
    %v56 = vsel %vm54, %v45, 0
    %58 = vmatpush.msra.mxu0 0.0
    %59 = vmatpush.msra.mxu0 0.0
    %60 = vmatpush.msra.mxu0 0.0
    %61 = vmatpush.msra.mxu0 0.0
    %62 = vmatpush.msra.mxu0 0.0
    %63 = vmatpush.msra.mxu0 0.0
    %64 = vmatpush.msra.mxu0 0.0
    %65 = vmatpush.msra.mxu0 0.0
    %66 = vmatpush.msra.mxu0 0.0
    %67 = vmatpush.msra.mxu0 0.0
    %68 = vmatpush.msra.mxu0 0.0
    %69 = vmatpush.msra.mxu0 0.0
    %70 = vmatpush.msra.mxu0 %v49
    %71 = vmatpush.msra.mxu0 %v48
    %72 = vmatpush.msra.mxu0 %v47
    %73 = vmatpush.msra.mxu0 %v46
    %74 = vmatmul.f32.gmra.mxu0 %v56
    %v75 = vpop.f32.mrf.mxu0
    %v76 = vadd.f32 %v52, %v75
    %77 = vdwg.mxu0
    %v78 = vlaneseq
    %v79 = vand.u32 %v78, 127
    %vm80 = vcmp.lt.s32.totalorder %v79, 5
    %vm81 = vcmp.ge.s32.totalorder %v79, 20
    %vm82 = vcmp.lt.s32.totalorder %v79, 35
    %vm83 = vmand %vm81, %vm82
    %v84 = vsel %vm80, %v76, -1e+30
    %85 = vmax.xlane.f32.xlu0 %v84
    %v86 = vpop.xlane.xlu0 %85
    %v87 = vsub.f32 %v76, %v86
    %v88 = vsel %vm80, %v87, %v76
    %v89 = vmul.f32 %v88, 1.442695
    %v90 = vpow.pop %v89
    %v91 = vsel %vm80, %v90, 0.0
    %92 = vadd.xlane.f32.xlu0 %v91
    %v93 = vpop.xlane.xlu0 %92
    %v94 = vrcp.pop %v93
    %v95 = vmul.f32 %v93, %v94
    %v96 = vsub.f32 1.0, %v95
    %v97 = vmul.f32 %v94, %v96
    %v98 = vadd.f32 %v94, %v97
    %vm99 = vweird.f32 %v93
    %vm100 = vweird.f32 %v94
    %vm101 = vmor %vm99, %vm100
    %v102 = vsel %vm101, %v94, %v98
    %v103 = vand.u32 2147483647, %v93
    %vm104 = vcmp.eq.f32.partialorder %v103, 8.507059e+37
    %v105 = vand.u32 %v93, 2147483648
    %v106 = vor.u32 1.1754944e-38, %v105
    %v107 = vsel %vm104, %v106, %v102
    %v108 = vmul.f32 %v90, %v107
    %v109 = vsel %vm83, %v90, %v76
    %v110 = vsel %vm80, %v108, %v109
    %111 = vst [vmem:[#allocation7] sm:$0xff] %v110
    // Predicated region
    $region22: #{tpu_custom_call.1} parent=1 // pred_check
      _
    $region23: #{tpu_custom_call.1} parent=1 // pred_check_branch
      %113 = sbr.rel (0) target = $region25
    $region24: #{tpu_custom_call.1} parent=1 // pred_region
      %115 = vsyncadd [#allocation4], 0
      %s117 = sshll.u32 [#allocation7], 4
      %s118 = int_to_ptr.vmem [resolvable:$true] %s117
      %s119 = sshll.u32 %s3, 4
      %s120 = int_to_ptr.hbm [resolvable:$true] %s119
      %122 = dma.vmem_to_hbm [thread:$0]  %s118, 128, %s120, [#allocation4]
    $region25: #{tpu_custom_call.1} parent=1 // pred_fallthru
      _
    // Predicated region
    $region26: #{tpu_custom_call.1} parent=1 // pred_check
      _
    $region27: #{tpu_custom_call.1} parent=1 // pred_check_branch
      %124 = sbr.rel (0) target = $region29
    $region28: #{tpu_custom_call.1} parent=1 // pred_region
      %126 = dma.done [#allocation4], 128
    $region29: #{tpu_custom_call.1} parent=1 // pred_fallthru
      _
    %127 = vsyncpa [#allocation3], 1
    %128 = vsyncpa [#allocation6], 1
    %129 = vsyncpa [#allocation4], 1

</llo_original>
